<compile_context>
chip_gen: v7x
topology: tpu7x:2x2x1
jax: 0.10.0
libtpu: 0.0.40
codegen_flags: <defaults>
</compile_context>

<pallas_src>
import numpy as np
import jax
import jax.numpy as jnp
from jax.experimental import pallas as pl
from jax.experimental.pallas import tpu as pltpu

BN_EPS = 1e-5
LANES = 128  # TPU lane width; all activations / param blocks are padded to this.


def _round_up(x, m):
    return (x + m - 1) // m * m


# -----------------------------------------------------------------------------
# Parameter init (mirrors Critic.__init__ / reset_parameters)
# -----------------------------------------------------------------------------
def init_critic_params(key, state_size, action_size, hidden_layer_sizes, inject_layer):
    if inject_layer < 0 or inject_layer >= len(hidden_layer_sizes) - 1:
        raise ValueError()

    def uniform(key, shape, lim):
        return jax.random.uniform(key, shape, jnp.float32, -lim, lim)

    params = {}
    # BatchNorm1d affine params (PyTorch default: gamma=1, beta=0).
    params["gamma"] = jnp.ones((1, state_size), jnp.float32)
    params["beta"] = jnp.zeros((1, state_size), jnp.float32)

    n_hidden = len(hidden_layer_sizes) - 1
    n_keys = 4 + sum(3 if i == inject_layer else 2 for i in range(n_hidden))
    keys = jax.random.split(key, n_keys)
    ki = iter(keys)

    # input_layer: weight (H0, S); hidden_init uses weight.size()[0] == out_features.
    h0 = hidden_layer_sizes[0]
    lim = 1.0 / np.sqrt(h0)
    params["w_in"] = uniform(next(ki), (h0, state_size), lim)
    params["b_in"] = uniform(next(ki), (1, h0), 1.0 / np.sqrt(state_size))

    params["hidden"] = []
    for i in range(n_hidden):
        in_f = hidden_layer_sizes[i]
        out_f = hidden_layer_sizes[i + 1]
        lim = 1.0 / np.sqrt(out_f)
        if i == inject_layer:
            # Split weight: columns acting on x (in_f) and on action (action_size).
            wx = uniform(next(ki), (out_f, in_f), lim)
            wa = uniform(next(ki), (out_f, action_size), lim)
            b = uniform(next(ki), (1, out_f), 1.0 / np.sqrt(in_f + action_size))
            params["hidden"].append(("inject", wx, wa, b))
        else:
            w = uniform(next(ki), (out_f, in_f), lim)
            b = uniform(next(ki), (1, out_f), 1.0 / np.sqrt(in_f))
            params["hidden"].append(("plain", w, b))

    # output_layer: weight uniform(-0.003, 0.003), bias default uniform(+-1/sqrt(fan_in)).
    h_last = hidden_layer_sizes[-1]
    params["w_out"] = uniform(next(ki), (1, h_last), 0.003)
    params["b_out"] = uniform(next(ki), (1, 1), 1.0 / np.sqrt(h_last))
    return params


# -----------------------------------------------------------------------------
# Host-side packing: one lane-dense (R, 128) f32 slab.
# -----------------------------------------------------------------------------
def pack_params(params, state_size, action_size, hidden_layer_sizes, batch):
    """Pack all parameters into ONE lane-dense (R, 128) f32 slab.

    * Weights are pre-transposed, zero-padded to full (128, 128) blocks
      (unmasked loads, single native MXU pass; padding is strictly zero so
      ReLU(0)=0 carries exact results forward).
    * BN affine (gamma/beta) folded into the first linear layer.
    * Inject layer's W_a placed at rows [S:S+A] so it consumes the raw fused
      (state|action) input directly (no concat, no lane slicing).
    * Biases and the scalar head weight replicated across `batch` sublanes.
    """
    S, A = state_size, action_size
    assert S + A <= LANES, "state_size + action_size must fit in 128 lanes"
    assert all(h <= LANES for h in hidden_layer_sizes), "hidden sizes must be <= 128"

    b_rows = _round_up(max(batch, 1), 8)

    gamma = np.asarray(params["gamma"], np.float32).reshape(-1)
    beta = np.asarray(params["beta"], np.float32).reshape(-1)
    w_in_t = np.asarray(params["w_in"], np.float32).T            # (S, H0)
    w1 = w_in_t * gamma[:, None]                                 # fold gamma
    b1 = np.asarray(params["b_in"], np.float32) + beta[None, :] @ w_in_t  # fold beta

    blocks = []

    def add(blk):
        assert blk.shape[0] % 8 == 0 and blk.shape[1] == LANES
        blocks.append(np.asarray(blk, np.float32))
        return len(blocks) - 1

    def weight_block(w_t, row_start=0):
        in_f, out_f = w_t.shape
        assert row_start + in_f <= LANES and out_f <= LANES
        blk = np.zeros((LANES, LANES), np.float32)          # padding strictly zero
        blk[row_start:row_start + in_f, :out_f] = w_t
        return add(blk)

    def bias_block(b_row):
        b_row = np.asarray(b_row, np.float32).reshape(1, -1)
        out_f = b_row.shape[1]
        blk = np.zeros((b_rows, LANES), np.float32)          # padding strictly zero
        blk[:, :out_f] = np.broadcast_to(b_row, (b_rows, out_f))
        return add(blk)

    layer_specs = []
    # First linear (BN-affine folded).  Rows >= S are zero, so the BN'd action
    # / pad lanes of the fused input contribute nothing.
    layer_specs.append(("linear", weight_block(w1), bias_block(b1)))

    for entry in params["hidden"]:
        if entry[0] == "inject":
            _, wx, wa, b = entry
            iwx = weight_block(np.asarray(wx, np.float32).T)
            # W_a rows sit at the raw fused input's action lanes [S : S+A].
            iwa = weight_block(np.asarray(wa, np.float32).T, row_start=S)
            layer_specs.append(("inject", iwx, iwa, bias_block(b)))
        else:
            _, w, b = entry
            layer_specs.append(("linear",
                                weight_block(np.asarray(w, np.float32).T),
                                bias_block(b)))

    # Scalar head: weight replicated across batch sublanes (VPU mul + XLU lane
    # reduce in the kernel); bias replicated into lane 0.
    h_last = hidden_layer_sizes[-1]
    wo = np.asarray(params["w_out"], np.float32).reshape(1, h_last)
    iwo = bias_block(wo)
    bo_blk = np.zeros((b_rows, LANES), np.float32)
    bo_blk[:, 0:1] = np.asarray(params["b_out"], np.float32).reshape(1, 1)
    ibo = add(bo_blk)
    layer_specs.append(("head", iwo, ibo))

    # Row offsets: every block is a multiple of 8 rows, 128 lanes wide.
    offsets, r = [], 0
    for blk in blocks:
        offsets.append(r)
        r += blk.shape[0]
    packed = np.concatenate(blocks, axis=0)
    assert packed.shape == (r, LANES)

    layout = []
    for spec in layer_specs:
        if spec[0] == "linear":
            layout.append(("linear", offsets[spec[1]], offsets[spec[2]]))
        elif spec[0] == "inject":
            layout.append(("inject", offsets[spec[1]], offsets[spec[2]], offsets[spec[3]]))
        else:
            layout.append(("head", offsets[spec[1]], offsets[spec[2]]))
    return jnp.asarray(packed), tuple(layout)


# -----------------------------------------------------------------------------
# Kernel
# -----------------------------------------------------------------------------
def _make_kernel(layout, batch):
    inv_n = 1.0 / float(batch)

    def kernel(xin_ref, p_ref, out_ref):
        # Fused (state | action | zero-pad) lane-dense input: (batch, 128).
        x_raw = xin_ref[...]

        # BatchNorm1d, training mode, single-pass per-lane batch statistics.
        # Lanes >= S hold (normalized) action / pad garbage, but every weight
        # row touching them is zero, so they never propagate.
        mean = jnp.sum(x_raw, axis=0, keepdims=True) * inv_n
        ex2 = jnp.sum(x_raw * x_raw, axis=0, keepdims=True) * inv_n
        var = jnp.maximum(ex2 - mean * mean, 0.0)
        x = (x_raw - mean) * jax.lax.rsqrt(var + BN_EPS)

        for spec in layout:
            kind = spec[0]
            if kind == "linear":
                _, w_off, b_off = spec
                w = p_ref[w_off:w_off + LANES, :]            # full (128,128) tile
                b = p_ref[b_off:b_off + batch, :]            # pre-replicated bias
                x = jnp.maximum(
                    jnp.dot(x, w, preferred_element_type=jnp.float32) + b, 0.0)
            elif kind == "inject":
                _, wx_off, wa_off, b_off = spec
                wx = p_ref[wx_off:wx_off + LANES, :]
                wa = p_ref[wa_off:wa_off + LANES, :]         # action rows at [S:S+A]
                b = p_ref[b_off:b_off + batch, :]
                x = jnp.maximum(
                    jnp.dot(x, wx, preferred_element_type=jnp.float32)
                    + jnp.dot(x_raw, wa, preferred_element_type=jnp.float32)
                    + b,
                    0.0)
            else:  # "head": out_features == 1 -> VPU multiply + XLU lane reduce.
                _, wo_off, bo_off = spec
                wo = p_ref[wo_off:wo_off + batch, :]         # pre-replicated head weight
                bo = p_ref[bo_off:bo_off + batch, 0:1]       # pre-replicated head bias
                out_ref[...] = jnp.sum(x * wo, axis=-1, keepdims=True) + bo

    return kernel


def build_critic_forward(layout, num_batches, batch, state_size, action_size,
                         packed_shape):
    R, C = packed_shape
    n_matmuls = sum(2 if s[0] == "inject" else (1 if s[0] == "linear" else 0)
                    for s in layout)
    flops = num_batches * (2 * batch * LANES * LANES * n_matmuls + 8 * batch * LANES)
    bytes_accessed = 4 * (num_batches * batch * (LANES + 1) + R * C)

    fwd = pl.pallas_call(
        _make_kernel(layout, batch),
        out_shape=jax.ShapeDtypeStruct((num_batches, batch, 1), jnp.float32),
        grid=(num_batches,),
        in_specs=[
            # One fused minibatch per grid step.
            pl.BlockSpec((None, batch, LANES), lambda g: (g, 0, 0)),
            # Packed params: constant index -> slab stays VMEM-resident.
            pl.BlockSpec((R, C), lambda g: (0, 0)),
        ],
        out_specs=pl.BlockSpec((None, batch, 1), lambda g: (g, 0, 0)),
        compiler_params=pltpu.CompilerParams(
            dimension_semantics=("parallel",)),  # lets v7x shard across both TCs
        cost_estimate=pl.CostEstimate(
            flops=flops,
            transcendentals=num_batches * LANES,   # per-lane rsqrt
            bytes_accessed=bytes_accessed),
    )

    pad = LANES - state_size - action_size

    @jax.jit
    def forward(state, action, packed_params):
        # state: (G, B, S), action: (G, B, A) -> fused lane-dense (G, B, 128).
        fused = jnp.concatenate(
            [state.astype(jnp.float32),
             action.astype(jnp.float32),
             jnp.zeros(state.shape[:-1] + (pad,), jnp.float32)],
            axis=-1)
        return fwd(fused, packed_params)

    return forward


# -----------------------------------------------------------------------------
# Pure-JAX reference mirroring the PyTorch forward (training-mode BN)
# -----------------------------------------------------------------------------
def critic_reference(params, state, action, inject_layer):
    x = state.astype(jnp.float32)
    mean = jnp.mean(x, axis=0, keepdims=True)
    var = jnp.mean(jnp.square(x - mean), axis=0, keepdims=True)
    x = (x - mean) / jnp.sqrt(var + BN_EPS) * params["gamma"] + params["beta"]
    x = jnp.maximum(x @ params["w_in"].T + params["b_in"], 0.0)
    for i, entry in enumerate(params["hidden"]):
        if i == inject_layer:
            _, wx, wa, b = entry
            w = jnp.concatenate([wx, wa], axis=1)
            x = jnp.concatenate([x, action], axis=1)
            x = jnp.maximum(x @ w.T + b, 0.0)
        else:
            _, w, b = entry
            x = jnp.maximum(x @ w.T + b, 0.0)
    return x @ params["w_out"].T + params["b_out"]


# -----------------------------------------------------------------------------
if __name__ == "__main__":
    num_batches = 2          # grid axis: independent minibatches (e.g. critic + target critic)
    batch = 8
    state_size = 16
    action_size = 4
    hidden_layer_sizes = [32, 32]
    inject_layer = 0

    key = jax.random.PRNGKey(0)
    k_state, k_action, k_params = jax.random.split(key, 3)

    state = jax.random.normal(k_state, (num_batches, batch, state_size), jnp.float32)
    action = jax.random.normal(k_action, (num_batches, batch, action_size), jnp.float32)

    params = init_critic_params(
        k_params, state_size, action_size, hidden_layer_sizes, inject_layer)
    packed, layout = pack_params(
        params, state_size, action_size, hidden_layer_sizes, batch)

    critic_forward = build_critic_forward(
        layout, num_batches, batch, state_size, action_size, packed.shape)

    q = critic_forward(state, action, packed)
    q = jax.block_until_ready(q)

    # Verify each independent minibatch against the pure-JAX reference
    # (identical to calling the PyTorch module once per minibatch).
    for g in range(num_batches):
        q_ref = critic_reference(params, state[g], action[g], inject_layer)
        np.testing.assert_allclose(np.asarray(q[g]), np.asarray(q_ref),
                                   rtol=1e-5, atol=1e-5)

    print("KERNEL_OK")
</pallas_src>

<mosaic_0001>
module attributes {stable_mosaic.version = 11 : i64} {
  func.func @kernel(%arg0: i32, %arg1: memref<1x8x128xf32, #tpu.memory_space<vmem>>, %arg2: memref<416x128xf32, #tpu.memory_space<vmem>>, %arg3: memref<1x8x1xf32, #tpu.memory_space<vmem>>) attributes {dimension_semantics = [#tpu.dimension_semantics<parallel>], iteration_bounds = array<i64: 2>, scalar_prefetch = 0 : i64, scratch_operands = 0 : i64, tpu.core_type = #tpu.core_type<tc>, window_params = [{transform_indices = @transform_0, window_bounds = array<i64: 1, 8, 128>}, {pipeline_mode = #tpu.pipeline_mode<synchronous>, transform_indices = @transform_1, window_bounds = array<i64: 416, 128>}, {transform_indices = @transform_2, window_bounds = array<i64: 1, 8, 1>}]} {
    %c0 = arith.constant 0 : index
    %c0_0 = arith.constant 0 : index
    %c0_1 = arith.constant 0 : index
    %0 = vector.load %arg1[%c0, %c0_0, %c0_1] : memref<1x8x128xf32, #tpu.memory_space<vmem>>, vector<1x8x128xf32>
    %1 = vector.shape_cast %0 : vector<1x8x128xf32> to vector<8x128xf32>
    %cst = arith.constant dense<0.000000e+00> : vector<128xf32>
    %2 = vector.multi_reduction <add>, %1, %cst [0] : vector<8x128xf32> to vector<128xf32>
    %3 = vector.shape_cast %2 : vector<128xf32> to vector<1x128xf32>
    %cst_2 = arith.constant 1.250000e-01 : f32
    %4 = vector.broadcast %cst_2 : f32 to vector<1x128xf32>
    %5 = arith.mulf %3, %4 : vector<1x128xf32>
    %6 = arith.mulf %1, %1 : vector<8x128xf32>
    %cst_3 = arith.constant dense<0.000000e+00> : vector<128xf32>
    %7 = vector.multi_reduction <add>, %6, %cst_3 [0] : vector<8x128xf32> to vector<128xf32>
    %8 = vector.shape_cast %7 : vector<128xf32> to vector<1x128xf32>
    %cst_4 = arith.constant 1.250000e-01 : f32
    %9 = vector.broadcast %cst_4 : f32 to vector<1x128xf32>
    %10 = arith.mulf %8, %9 : vector<1x128xf32>
    %11 = arith.mulf %5, %5 : vector<1x128xf32>
    %12 = arith.subf %10, %11 : vector<1x128xf32>
    %cst_5 = arith.constant 0.000000e+00 : f32
    %13 = vector.broadcast %cst_5 : f32 to vector<1x128xf32>
    %14 = arith.maximumf %12, %13 : vector<1x128xf32>
    %15 = vector.broadcast %5 : vector<1x128xf32> to vector<8x128xf32>
    %16 = arith.subf %1, %15 : vector<8x128xf32>
    %cst_6 = arith.constant 9.99999974E-6 : f32
    %17 = vector.broadcast %cst_6 : f32 to vector<1x128xf32>
    %18 = arith.addf %14, %17 : vector<1x128xf32>
    %19 = math.rsqrt %18 : vector<1x128xf32>
    %20 = vector.broadcast %19 : vector<1x128xf32> to vector<8x128xf32>
    %21 = arith.mulf %16, %20 : vector<8x128xf32>
    %c0_7 = arith.constant 0 : index
    %c0_8 = arith.constant 0 : index
    %22 = vector.load %arg2[%c0_7, %c0_8] : memref<416x128xf32, #tpu.memory_space<vmem>>, vector<128x128xf32>
    %c128 = arith.constant 128 : index
    %c0_9 = arith.constant 0 : index
    %23 = vector.load %arg2[%c128, %c0_9] : memref<416x128xf32, #tpu.memory_space<vmem>>, vector<8x128xf32>
    %cst_10 = arith.constant dense<0.000000e+00> : vector<8x128xf32>
    %24 = tpu.matmul %21, %22, %cst_10 {dimension_numbers = #tpu.dot_dimension_numbers<[1], [0], [0], [1], [0, 0, 1, 1], [], []>} : vector<8x128xf32>, vector<128x128xf32>, vector<8x128xf32> -> vector<8x128xf32>
    %25 = arith.addf %24, %23 : vector<8x128xf32>
    %cst_11 = arith.constant 0.000000e+00 : f32
    %26 = vector.broadcast %cst_11 : f32 to vector<8x128xf32>
    %27 = arith.maximumf %25, %26 : vector<8x128xf32>
    %c136 = arith.constant 136 : index
    %c0_12 = arith.constant 0 : index
    %28 = vector.load %arg2[%c136, %c0_12] : memref<416x128xf32, #tpu.memory_space<vmem>>, vector<128x128xf32>
    %c264 = arith.constant 264 : index
    %c0_13 = arith.constant 0 : index
    %29 = vector.load %arg2[%c264, %c0_13] : memref<416x128xf32, #tpu.memory_space<vmem>>, vector<128x128xf32>
    %c392 = arith.constant 392 : index
    %c0_14 = arith.constant 0 : index
    %30 = vector.load %arg2[%c392, %c0_14] : memref<416x128xf32, #tpu.memory_space<vmem>>, vector<8x128xf32>
    %cst_15 = arith.constant dense<0.000000e+00> : vector<8x128xf32>
    %31 = tpu.matmul %27, %28, %cst_15 {dimension_numbers = #tpu.dot_dimension_numbers<[1], [0], [0], [1], [0, 0, 1, 1], [], []>} : vector<8x128xf32>, vector<128x128xf32>, vector<8x128xf32> -> vector<8x128xf32>
    %cst_16 = arith.constant dense<0.000000e+00> : vector<8x128xf32>
    %32 = tpu.matmul %1, %29, %cst_16 {dimension_numbers = #tpu.dot_dimension_numbers<[1], [0], [0], [1], [0, 0, 1, 1], [], []>} : vector<8x128xf32>, vector<128x128xf32>, vector<8x128xf32> -> vector<8x128xf32>
    %33 = arith.addf %31, %32 : vector<8x128xf32>
    %34 = arith.addf %33, %30 : vector<8x128xf32>
    %cst_17 = arith.constant 0.000000e+00 : f32
    %35 = vector.broadcast %cst_17 : f32 to vector<8x128xf32>
    %36 = arith.maximumf %34, %35 : vector<8x128xf32>
    %c400 = arith.constant 400 : index
    %c0_18 = arith.constant 0 : index
    %37 = vector.load %arg2[%c400, %c0_18] : memref<416x128xf32, #tpu.memory_space<vmem>>, vector<8x128xf32>
    %c408 = arith.constant 408 : index
    %c0_19 = arith.constant 0 : index
    %38 = vector.load %arg2[%c408, %c0_19] : memref<416x128xf32, #tpu.memory_space<vmem>>, vector<8x1xf32>
    %39 = arith.mulf %36, %37 : vector<8x128xf32>
    %cst_20 = arith.constant dense<0.000000e+00> : vector<8xf32>
    %40 = vector.multi_reduction <add>, %39, %cst_20 [1] : vector<8x128xf32> to vector<8xf32>
    %41 = vector.shape_cast %40 : vector<8xf32> to vector<8x1xf32>
    %42 = arith.addf %41, %38 : vector<8x1xf32>
    %c0_21 = arith.constant 0 : index
    %c0_22 = arith.constant 0 : index
    %c0_23 = arith.constant 0 : index
    %43 = vector.load %arg3[%c0_21, %c0_22, %c0_23] : memref<1x8x1xf32, #tpu.memory_space<vmem>>, vector<1x8x1xf32>
    %44 = vector.shape_cast %43 : vector<1x8x1xf32> to vector<8x1xf32>
    %45 = vector.shape_cast %42 : vector<8x1xf32> to vector<1x8x1xf32>
    tpu.vector_store %arg3[%c0_21, %c0_22, %c0_23], %45 {strides = array<i32>} : memref<1x8x1xf32, #tpu.memory_space<vmem>>, vector<1x8x1xf32>,
    return
  }
  func.func @transform_0(%arg0: i32) -> (i32, i32, i32) {
    %c0_i32 = arith.constant 0 : i32
    %c0_i32_0 = arith.constant 0 : i32
    %c0_i32_1 = arith.constant 0 : i32
    return %arg0, %c0_i32, %c0_i32_0 : i32, i32, i32
  }
  func.func @transform_1(%arg0: i32) -> (i32, i32) {
    %c0_i32 = arith.constant 0 : i32
    %c0_i32_0 = arith.constant 0 : i32
    %c0_i32_1 = arith.constant 0 : i32
    return %c0_i32, %c0_i32_0 : i32, i32
  }
  func.func @transform_2(%arg0: i32) -> (i32, i32, i32) {
    %c0_i32 = arith.constant 0 : i32
    %c0_i32_0 = arith.constant 0 : i32
    %c0_i32_1 = arith.constant 0 : i32
    return %arg0, %c0_i32, %c0_i32_0 : i32, i32, i32
  }
}

</mosaic_0001>

<llo_original>
// kernel: forward.1
$region0: #{forward.1}
  #allocation0 [shape = 'u32[]', space=smem, size = 0x4, offset = 0x4, fixed_abs, tag = 'smem constant byte address 0x4 - core index']
  #allocation1 [shape = 'u32[144,128]{1,0:T(1,128)}', space=vmem, size = 0x12000, scoped, tag = 'internal scratch']
  %s0 = inlined_call_operand.vmem [shape: f32[2,8,128], index: 0, kind: input, shape index: {}]
  %s1 = inlined_call_operand.hbm [shape: f32[416,128], index: 1, kind: input, shape index: {}]
  %s2 = inlined_call_operand.vmem [shape: f32[2,8,1], index: 2, kind: output, shape index: {}]
  %s3 = sld [smem:[#allocation0]]
  $region45: #{forward.1} parent=0
    _
  %s5 = ssub.s32 1, %s3
  %s6 = scalar_select 0, %s5, %s3
  $region1: #{forward.1} parent=0
    #allocation2 [shape = 'u8[212992]{0}', space=vmem, size = 0x34000, scoped, tag = 'input window, operand 1, single buffered']
    #allocation3 [shape = 's32[2]{0}', space=sflag, size = 0x8, scoped, tag = 'scoped memory for forward.1']
    %7 = vsyncpa [#allocation3], 0
    loop: start=0, step=1, limit=4
    $region2: #{forward.1} parent=1 // loop_pre_header
      _
    $region3: #{forward.1} parent=1 // loop_header
      %s9 = sphi 0, %s13
      %p10 = scmp.ge.s32.totalorder %s9, 4
      %s19 = sphi 0, %s21
      %s22 = sphi 0, %s19
      %s23 = sphi 0, %s22
      %s39 = sphi 0, %s23
      %s43 = sphi 0, %s43
      %s45 = sphi 0, %s43
      %s46 = sphi 0, %s45
      %s60 = sphi 0, %s46
      %s66 = sphi 0, %s68
      %s69 = sphi 0, %s66
      %s70 = sphi 0, %s69
      %s86 = sphi 0, %s70
    $region4: #{forward.1} parent=1 // loop_header_branch
      %12 = sbr.rel (%p10) target = $region8
    $region5: #{forward.1} parent=1 // loop_body
      %s14 = ssub.s32 %s9, 1
      %s15 = ssub.s32 %s9, 2
      %s16 = sadd.s32 %s9, 1
      %s17 = ssub.s32 %s9, %s16
      %p18 = scmp.eq.s32.totalorder %s17, 0
      %s20 = sadd.s32 %s19, 1
      %s21 = scalar_select %p18, %s19, %s20
      %p24 = pneg %p18
      %p25 = scmp.eq.s32.totalorder %s9, 1
      %p26 = por %p24, %p25
      %p27 = scmp.ne.s32.totalorder %s19, %s22
      %p28 = scmp.eq.s32.totalorder %s9, 0
      %p29 = por %p27, %p28
      %p30 = scmp.ne.s32.totalorder %s19, %s22
      %p31 = scmp.eq.s32.totalorder %s14, 1
      %p32 = por %p30, %p31
      %p33 = scmp.ne.s32.totalorder %s22, %s23
      %p34 = scmp.eq.s32.totalorder %s14, 0
      %p35 = por %p33, %p34
      %p36 = scmp.ne.s32.totalorder %s22, %s23
      %p37 = scmp.eq.s32.totalorder %s15, 1
      %p38 = por %p36, %p37
      %p40 = scmp.ne.s32.totalorder %s23, %s39
      %p41 = scmp.eq.s32.totalorder %s15, 0
      %p42 = por %p40, %p41
      %s44 = sadd.s32 %s43, 1
      %p47 = scmp.eq.s32.totalorder %s9, 1
      %p48 = scmp.ne.s32.totalorder %s43, %s45
      %p49 = scmp.eq.s32.totalorder %s9, 0
      %p50 = por %p48, %p49
      %p51 = scmp.ne.s32.totalorder %s43, %s45
      %p52 = scmp.eq.s32.totalorder %s14, 1
      %p53 = por %p51, %p52
      %p54 = scmp.ne.s32.totalorder %s45, %s46
      %p55 = scmp.eq.s32.totalorder %s14, 0
      %p56 = por %p54, %p55
      %p57 = scmp.ne.s32.totalorder %s45, %s46
      %p58 = scmp.eq.s32.totalorder %s15, 1
      %p59 = por %p57, %p58
      %p61 = scmp.ne.s32.totalorder %s46, %s60
      %p62 = scmp.eq.s32.totalorder %s15, 0
      %p63 = por %p61, %p62
      %s64 = ssub.s32 %s9, %s16
      %p65 = scmp.eq.s32.totalorder %s64, 0
      %s67 = sadd.s32 %s66, 1
      %s68 = scalar_select %p65, %s66, %s67
      %p71 = pneg %p65
      %p72 = scmp.eq.s32.totalorder %s9, 1
      %p73 = por %p71, %p72
      %p74 = scmp.ne.s32.totalorder %s66, %s69
      %p75 = scmp.eq.s32.totalorder %s9, 0
      %p76 = por %p74, %p75
      %p77 = scmp.ne.s32.totalorder %s66, %s69
      %p78 = scmp.eq.s32.totalorder %s14, 1
      %p79 = por %p77, %p78
      %p80 = scmp.ne.s32.totalorder %s69, %s70
      %p81 = scmp.eq.s32.totalorder %s14, 0
      %p82 = por %p80, %p81
      %p83 = scmp.ne.s32.totalorder %s69, %s70
      %p84 = scmp.eq.s32.totalorder %s15, 1
      %p85 = por %p83, %p84
      %p87 = scmp.ne.s32.totalorder %s70, %s86
      %p88 = scmp.eq.s32.totalorder %s15, 0
      %p89 = por %p87, %p88
      %p90 = scmp.le.s32.totalorder 1, %s9
      %p91 = scmp.lt.s32.totalorder %s9, 3
      %p92 = pnand %p90, %p91
      %p93 = pneg %p92
      // Predicated region
      $region9: #{forward.1} parent=5 // pred_check
        _
      $region10: #{forward.1} parent=5 // pred_check_branch
        %95 = sbr.rel (%p92) target = $region12
      $region11: #{forward.1} parent=5 // pred_region
        %s96 = ssub.s32 %s9, 1
        // Predicated region
        $region13: #{forward.1} parent=11 // pred_check
          %p97 = pneg %p56
        $region14: #{forward.1} parent=11 // pred_check_branch
          %99 = sbr.rel (%p97) target = $region16
        $region15: #{forward.1} parent=11 // pred_region
          %s101 = ssub.s32 6656, 6656
          %102 = vsyncadd [#allocation3], %s101
          %s103 = sshll.u32 [#allocation2], 4
          %s104 = int_to_ptr.vmem [resolvable:$true] %s103
          %109 = dma.hbm_to_vmem [thread:$0]  %s1, 6656, %s104, [#allocation3], 128, 128, 8
        $region16: #{forward.1} parent=11 // pred_fallthru
          _
      $region12: #{forward.1} parent=5 // pred_fallthru
        _
      %p110 = scmp.lt.s32.totalorder %s9, 2
      // Predicated region
      $region17: #{forward.1} parent=5 // pred_check
        %p111 = pneg %p110
      $region18: #{forward.1} parent=5 // pred_check_branch
        %113 = sbr.rel (%p111) target = $region20
      $region19: #{forward.1} parent=5 // pred_region
        // Predicated region
        $region21: #{forward.1} parent=19 // pred_check
          %p114 = pneg %p29
        $region22: #{forward.1} parent=19 // pred_check_branch
          %116 = sbr.rel (%p114) target = $region24
        $region23: #{forward.1} parent=19 // pred_region
          %p117 = scmp.lt.s32.totalorder %s9, 1
          %s118 = scalar_select %p117, %s9, 1
          %s119 = smul.addr %s118, 8
          %s120 = scalar_lea.vmem %s0, %s119
        $region24: #{forward.1} parent=19 // pred_fallthru
          _
      $region20: #{forward.1} parent=5 // pred_fallthru
        _
      %p121 = scmp.le.s32.totalorder 1, %s9
      %p122 = scmp.lt.s32.totalorder %s9, 3
      %p123 = pnand %p121, %p122
      %p124 = pneg %p123
      // Predicated region
      $region25: #{forward.1} parent=5 // pred_check
        _
      $region26: #{forward.1} parent=5 // pred_check_branch
        %126 = sbr.rel (%p123) target = $region28
      $region27: #{forward.1} parent=5 // pred_region
        %s127 = ssub.s32 %s9, 1
        // Predicated region
        $region29: #{forward.1} parent=27 // pred_check
          %p128 = pneg %p56
        $region30: #{forward.1} parent=27 // pred_check_branch
          %130 = sbr.rel (%p128) target = $region32
        $region31: #{forward.1} parent=27 // pred_region
          %131 = dma.done [#allocation3], 6656
        $region32: #{forward.1} parent=27 // pred_fallthru
          _
        %p132 = scmp.lt.s32.totalorder %s14, 1
        %s133 = scalar_select %p132, %s14, 1
        %s134 = smul.addr %s133, 8
        %s135 = scalar_lea.vmem %s0, %s134
        %p136 = pneg %p35
        %p137 = pneg %p32
        %p138 = pneg %p56
        %p139 = pneg %p53
        %p140 = pneg %p82
        %p141 = pneg %p79
        %p142 = scmp.lt.s32.totalorder %s14, 1
        %s143 = scalar_select %p142, %s14, 1
        %s144 = smul.addr %s143, 8
        %s145 = scalar_lea.vmem %s2, %s144
        %p146 = scmp.lt.s32.totalorder %s14, 1
        %s147 = scalar_select %p146, %s14, 1
        %s148 = smul.addr %s147, 8
        %s149 = scalar_lea.vmem %s0, %s148
        %p150 = scmp.lt.s32.totalorder %s14, 1
        %s151 = scalar_select %p150, %s14, 1
        %s152 = smul.addr %s151, 8
        %s153 = scalar_lea.vmem %s2, %s152
        %v154 = vld [vmem:[%s149] sm:$0xff]
        %v155 = vrot.slane %v154, 4
        %v156 = vadd.f32 %v154, %v155
        %v157 = vrot.slane %v156, 2
        %v158 = vadd.f32 %v156, %v157
        %v159 = vrot.slane %v158, 1
        %v160 = vadd.f32 %v158, %v159
        %v161 = vmul.f32 %v160, 0.125
        %v162 = vmul.f32 %v154, %v154
        %v163 = vrot.slane %v162, 4
        %v164 = vadd.f32 %v162, %v163
        %v165 = vrot.slane %v164, 2
        %v166 = vadd.f32 %v164, %v165
        %v167 = vrot.slane %v166, 1
        %v168 = vadd.f32 %v166, %v167
        %v169 = vmul.f32 %v168, 0.125
        %v170 = vmul.f32 %v161, %v161
        %v171 = vsub.f32 %v169, %v170
        %v172 = vmax.f32 %v171, 0.0
        %v173 = vsub.f32 %v154, %v161
        %v174 = vadd.f32 %v172, 1e-05
        %v175 = vrsqrt.pop %v174
        %v176 = vmul.f32 %v173, %v175
        %v177 = vld [vmem:[#allocation2] sm:$0xff]
        %v178 = vld [vmem:[#allocation2 + $0x8] sm:$0xff]
        %v179 = vld [vmem:[#allocation2 + $0x10] sm:$0xff]
        %v180 = vld [vmem:[#allocation2 + $0x18] sm:$0xff]
        %v181 = vld [vmem:[#allocation2 + $0x20] sm:$0xff]
        %v182 = vld [vmem:[#allocation2 + $0x28] sm:$0xff]
        %v183 = vld [vmem:[#allocation2 + $0x30] sm:$0xff]
        %v184 = vld [vmem:[#allocation2 + $0x38] sm:$0xff]
        %v185 = vld [vmem:[#allocation2 + $0x40] sm:$0xff]
        %v186 = vld [vmem:[#allocation2 + $0x48] sm:$0xff]
        %v187 = vld [vmem:[#allocation2 + $0x50] sm:$0xff]
        %v188 = vld [vmem:[#allocation2 + $0x58] sm:$0xff]
        %v189 = vld [vmem:[#allocation2 + $0x60] sm:$0xff]
        %v190 = vld [vmem:[#allocation2 + $0x68] sm:$0xff]
        %v191 = vld [vmem:[#allocation2 + $0x70] sm:$0xff]
        %v192 = vld [vmem:[#allocation2 + $0x78] sm:$0xff]
        %v193 = vld [vmem:[#allocation2 + $0x80] sm:$0xff]
        %194 = vmatprep.subr.mxu0 0.0
        %195 = vmatpush1.msra.mxu0 %v177
        %196 = vmatprep.subr.mxu0 0.0
        %197 = vmatpush1.msra.mxu0 %v178
        %198 = vmatprep.subr.mxu0 0.0
        %199 = vmatpush1.msra.mxu0 %v179
        %200 = vmatprep.subr.mxu0 0.0
        %201 = vmatpush1.msra.mxu0 %v180
        %202 = vmatprep.subr.mxu0 0.0
        %203 = vmatpush1.msra.mxu0 %v181
        %204 = vmatprep.subr.mxu0 0.0
        %205 = vmatpush1.msra.mxu0 %v182
        %206 = vmatprep.subr.mxu0 0.0
        %207 = vmatpush1.msra.mxu0 %v183
        %208 = vmatprep.subr.mxu0 0.0
        %209 = vmatpush1.msra.mxu0 %v184
        %210 = vmatprep.subr.mxu0 0.0
        %211 = vmatpush1.msra.mxu0 %v185
        %212 = vmatprep.subr.mxu0 0.0
        %213 = vmatpush1.msra.mxu0 %v186
        %214 = vmatprep.subr.mxu0 0.0
        %215 = vmatpush1.msra.mxu0 %v187
        %216 = vmatprep.subr.mxu0 0.0
        %217 = vmatpush1.msra.mxu0 %v188
        %218 = vmatprep.subr.mxu0 0.0
        %219 = vmatpush1.msra.mxu0 %v189
        %220 = vmatprep.subr.mxu0 0.0
        %221 = vmatpush1.msra.mxu0 %v190
        %222 = vmatprep.subr.mxu0 0.0
        %223 = vmatpush1.msra.mxu0 %v191
        %224 = vmatprep.subr.mxu0 0.0
        %225 = vmatpush1.msra.mxu0 %v192
        %226 = vmatprep.subr.mxu0 0.0
        %227 = vmatpush1.msra.mxu0 0.0
        %228 = vmatprep.subr.mxu0 0.0
        %229 = vmatpush1.msra.mxu0 0.0
        %230 = vmatprep.subr.mxu0 0.0
        %231 = vmatpush1.msra.mxu0 0.0
        %232 = vmatprep.subr.mxu0 0.0
        %233 = vmatpush1.msra.mxu0 0.0
        %234 = vmatprep.subr.mxu0 0.0
        %235 = vmatpush1.msra.mxu0 0.0
        %236 = vmatprep.subr.mxu0 0.0
        %237 = vmatpush1.msra.mxu0 0.0
        %238 = vmatprep.subr.mxu0 0.0
        %239 = vmatpush1.msra.mxu0 0.0
        %240 = vmatprep.subr.mxu0 0.0
        %241 = vmatpush1.msra.mxu0 0.0
        %242 = vmatprep.subr.mxu0 0.0
        %243 = vmatpush1.msra.mxu0 0.0
        %244 = vmatprep.subr.mxu0 0.0
        %245 = vmatpush1.msra.mxu0 0.0
        %246 = vmatprep.subr.mxu0 0.0
        %247 = vmatpush1.msra.mxu0 0.0
        %248 = vmatprep.subr.mxu0 0.0
        %249 = vmatpush1.msra.mxu0 0.0
        %250 = vmatprep.subr.mxu0 0.0
        %251 = vmatpush1.msra.mxu0 0.0
        %252 = vmatprep.subr.mxu0 0.0
        %253 = vmatpush1.msra.mxu0 0.0
        %254 = vmatprep.subr.mxu0 0.0
        %255 = vmatpush1.msra.mxu0 0.0
        %256 = vmatprep.subr.mxu0 0.0
        %257 = vmatpush1.msra.mxu0 0.0
        %258 = vmatprep.mubr.f32.mxu0 0.0
        %259 = vmatmul.mubr.f32.gmra.mrb[0].mxu0 %v176
        %v260 = vpop.f32.mrb[0].mxu0
        %v261 = vadd.f32 %v193, %v260
        %v262 = vpop.f32.mrb[0].mxu0
        %263 = vdwg.mxu0
        %v264 = vmax.f32 %v261, 0.0
        %v265 = vld [vmem:[#allocation2 + $0x88] sm:$0xff]
        %v266 = vld [vmem:[#allocation2 + $0x90] sm:$0xff]
        %v267 = vld [vmem:[#allocation2 + $0x98] sm:$0xff]
        %v268 = vld [vmem:[#allocation2 + $0xa0] sm:$0xff]
        %v269 = vld [vmem:[#allocation2 + $0xa8] sm:$0xff]
        %v270 = vld [vmem:[#allocation2 + $0xb0] sm:$0xff]
        %v271 = vld [vmem:[#allocation2 + $0xb8] sm:$0xff]
        %v272 = vld [vmem:[#allocation2 + $0xc0] sm:$0xff]
        %v273 = vld [vmem:[#allocation2 + $0xc8] sm:$0xff]
        %v274 = vld [vmem:[#allocation2 + $0xd0] sm:$0xff]
        %v275 = vld [vmem:[#allocation2 + $0xd8] sm:$0xff]
        %v276 = vld [vmem:[#allocation2 + $0xe0] sm:$0xff]
        %v277 = vld [vmem:[#allocation2 + $0xe8] sm:$0xff]
        %v278 = vld [vmem:[#allocation2 + $0xf0] sm:$0xff]
        %v279 = vld [vmem:[#allocation2 + $0xf8] sm:$0xff]
        %v280 = vld [vmem:[#allocation2 + $0x100] sm:$0xff]
        %v281 = vld [vmem:[#allocation2 + $0x108] sm:$0xff]
        %v282 = vld [vmem:[#allocation2 + $0x110] sm:$0xff]
        %v283 = vld [vmem:[#allocation2 + $0x118] sm:$0xff]
        %v284 = vld [vmem:[#allocation2 + $0x120] sm:$0xff]
        %v285 = vld [vmem:[#allocation2 + $0x128] sm:$0xff]
        %v286 = vld [vmem:[#allocation2 + $0x130] sm:$0xff]
        %v287 = vld [vmem:[#allocation2 + $0x138] sm:$0xff]
        %v288 = vld [vmem:[#allocation2 + $0x140] sm:$0xff]
        %v289 = vld [vmem:[#allocation2 + $0x148] sm:$0xff]
        %v290 = vld [vmem:[#allocation2 + $0x150] sm:$0xff]
        %v291 = vld [vmem:[#allocation2 + $0x158] sm:$0xff]
        %v292 = vld [vmem:[#allocation2 + $0x160] sm:$0xff]
        %v293 = vld [vmem:[#allocation2 + $0x168] sm:$0xff]
        %v294 = vld [vmem:[#allocation2 + $0x170] sm:$0xff]
        %v295 = vld [vmem:[#allocation2 + $0x178] sm:$0xff]
        %v296 = vld [vmem:[#allocation2 + $0x180] sm:$0xff]
        %v297 = vld [vmem:[#allocation2 + $0x188] sm:$0xff]
        %298 = vmatprep.subr.mxu0 0.0
        %299 = vmatpush1.msra.mxu0 %v281
        %300 = vmatprep.subr.mxu0 0.0
        %301 = vmatpush1.msra.mxu0 %v282
        %302 = vmatprep.subr.mxu0 0.0
        %303 = vmatpush1.msra.mxu0 %v283
        %304 = vmatprep.subr.mxu0 0.0
        %305 = vmatpush1.msra.mxu0 %v284
        %306 = vmatprep.subr.mxu0 0.0
        %307 = vmatpush1.msra.mxu0 %v285
        %308 = vmatprep.subr.mxu0 0.0
        %309 = vmatpush1.msra.mxu0 %v286
        %310 = vmatprep.subr.mxu0 0.0
        %311 = vmatpush1.msra.mxu0 %v287
        %312 = vmatprep.subr.mxu0 0.0
        %313 = vmatpush1.msra.mxu0 %v288
        %314 = vmatprep.subr.mxu0 0.0
        %315 = vmatpush1.msra.mxu0 %v289
        %316 = vmatprep.subr.mxu0 0.0
        %317 = vmatpush1.msra.mxu0 %v290
        %318 = vmatprep.subr.mxu0 0.0
        %319 = vmatpush1.msra.mxu0 %v291
        %320 = vmatprep.subr.mxu0 0.0
        %321 = vmatpush1.msra.mxu0 %v292
        %322 = vmatprep.subr.mxu0 0.0
        %323 = vmatpush1.msra.mxu0 %v293
        %324 = vmatprep.subr.mxu0 0.0
        %325 = vmatpush1.msra.mxu0 %v294
        %326 = vmatprep.subr.mxu0 0.0
        %327 = vmatpush1.msra.mxu0 %v295
        %328 = vmatprep.subr.mxu0 0.0
        %329 = vmatpush1.msra.mxu0 %v296
        %330 = vmatprep.subr.mxu0 0.0
        %331 = vmatpush1.msra.mxu0 0.0
        %332 = vmatprep.subr.mxu0 0.0
        %333 = vmatpush1.msra.mxu0 0.0
        %334 = vmatprep.subr.mxu0 0.0
        %335 = vmatpush1.msra.mxu0 0.0
        %336 = vmatprep.subr.mxu0 0.0
        %337 = vmatpush1.msra.mxu0 0.0
        %338 = vmatprep.subr.mxu0 0.0
        %339 = vmatpush1.msra.mxu0 0.0
        %340 = vmatprep.subr.mxu0 0.0
        %341 = vmatpush1.msra.mxu0 0.0
        %342 = vmatprep.subr.mxu0 0.0
        %343 = vmatpush1.msra.mxu0 0.0
        %344 = vmatprep.subr.mxu0 0.0
        %345 = vmatpush1.msra.mxu0 0.0
        %346 = vmatprep.subr.mxu0 0.0
        %347 = vmatpush1.msra.mxu0 0.0
        %348 = vmatprep.subr.mxu0 0.0
        %349 = vmatpush1.msra.mxu0 0.0
        %350 = vmatprep.subr.mxu0 0.0
        %351 = vmatpush1.msra.mxu0 0.0
        %352 = vmatprep.subr.mxu0 0.0
        %353 = vmatpush1.msra.mxu0 0.0
        %354 = vmatprep.subr.mxu0 0.0
        %355 = vmatpush1.msra.mxu0 0.0
        %356 = vmatprep.subr.mxu0 0.0
        %357 = vmatpush1.msra.mxu0 0.0
        %358 = vmatprep.subr.mxu0 0.0
        %359 = vmatpush1.msra.mxu0 0.0
        %360 = vmatprep.subr.mxu0 0.0
        %361 = vmatpush1.msra.mxu0 0.0
        %362 = vmatprep.mubr.f32.mxu0 0.0
        %363 = vmatmul.mubr.f32.gmra.mrb[0].mxu0 %v154
        %v364 = vpop.f32.mrb[0].mxu0
        %v365 = vadd.f32 0.0, %v364
        %v366 = vpop.f32.mrb[0].mxu0
        %367 = vdwg.mxu0
        %368 = vmatprep.subr.mxu0 0.0
        %369 = vmatpush1.msra.mxu0 %v265
        %370 = vmatprep.subr.mxu0 0.0
        %371 = vmatpush1.msra.mxu0 %v266
        %372 = vmatprep.subr.mxu0 0.0
        %373 = vmatpush1.msra.mxu0 %v267
        %374 = vmatprep.subr.mxu0 0.0
        %375 = vmatpush1.msra.mxu0 %v268
        %376 = vmatprep.subr.mxu0 0.0
        %377 = vmatpush1.msra.mxu0 %v269
        %378 = vmatprep.subr.mxu0 0.0
        %379 = vmatpush1.msra.mxu0 %v270
        %380 = vmatprep.subr.mxu0 0.0
        %381 = vmatpush1.msra.mxu0 %v271
        %382 = vmatprep.subr.mxu0 0.0
        %383 = vmatpush1.msra.mxu0 %v272
        %384 = vmatprep.subr.mxu0 0.0
        %385 = vmatpush1.msra.mxu0 %v273
        %386 = vmatprep.subr.mxu0 0.0
        %387 = vmatpush1.msra.mxu0 %v274
        %388 = vmatprep.subr.mxu0 0.0
        %389 = vmatpush1.msra.mxu0 %v275
        %390 = vmatprep.subr.mxu0 0.0
        %391 = vmatpush1.msra.mxu0 %v276
        %392 = vmatprep.subr.mxu0 0.0
        %393 = vmatpush1.msra.mxu0 %v277
        %394 = vmatprep.subr.mxu0 0.0
        %395 = vmatpush1.msra.mxu0 %v278
        %396 = vmatprep.subr.mxu0 0.0
        %397 = vmatpush1.msra.mxu0 %v279
        %398 = vmatprep.subr.mxu0 0.0
        %399 = vmatpush1.msra.mxu0 %v280
        %400 = vmatprep.subr.mxu0 0.0
        %401 = vmatpush1.msra.mxu0 0.0
        %402 = vmatprep.subr.mxu0 0.0
        %403 = vmatpush1.msra.mxu0 0.0
        %404 = vmatprep.subr.mxu0 0.0
        %405 = vmatpush1.msra.mxu0 0.0
        %406 = vmatprep.subr.mxu0 0.0
        %407 = vmatpush1.msra.mxu0 0.0
        %408 = vmatprep.subr.mxu0 0.0
        %409 = vmatpush1.msra.mxu0 0.0
        %410 = vmatprep.subr.mxu0 0.0
        %411 = vmatpush1.msra.mxu0 0.0
        %412 = vmatprep.subr.mxu0 0.0
        %413 = vmatpush1.msra.mxu0 0.0
        %414 = vmatprep.subr.mxu0 0.0
        %415 = vmatpush1.msra.mxu0 0.0
        %416 = vmatprep.subr.mxu0 0.0
        %417 = vmatpush1.msra.mxu0 0.0
        %418 = vmatprep.subr.mxu0 0.0
        %419 = vmatpush1.msra.mxu0 0.0
        %420 = vmatprep.subr.mxu0 0.0
        %421 = vmatpush1.msra.mxu0 0.0
        %422 = vmatprep.subr.mxu0 0.0
        %423 = vmatpush1.msra.mxu0 0.0
        %424 = vmatprep.subr.mxu0 0.0
        %425 = vmatpush1.msra.mxu0 0.0
        %426 = vmatprep.subr.mxu0 0.0
        %427 = vmatpush1.msra.mxu0 0.0
        %428 = vmatprep.subr.mxu0 0.0
        %429 = vmatpush1.msra.mxu0 0.0
        %430 = vmatprep.subr.mxu0 0.0
        %431 = vmatpush1.msra.mxu0 0.0
        %432 = vmatprep.mubr.f32.mxu0 0.0
        %433 = vmatmul.mubr.f32.gmra.mrb[0].mxu0 %v264
        %v434 = vpop.f32.mrb[0].mxu0
        %v435 = vadd.f32 %v365, %v434
        %v436 = vpop.f32.mrb[0].mxu0
        %437 = vdwg.mxu0
        %v438 = vadd.f32 %v435, %v297
        %v439 = vmax.f32 %v438, 0.0
        %v440 = vld [vmem:[#allocation2 + $0x190] sm:$0xff]
        %v441 = vld [vmem:[#allocation2 + $0x198] sm:$0xff]
        %v442 = vmul.f32 %v439, %v440
        %443 = vadd.xlane.f32.xlu0 %v442
        %v444 = vpop.xlane.xlu0 %443
        %v445 = vadd.f32 %v444, %v441
        %vm446 = vcmask 7168
        %447 = vst.msk [vmem:[%s153] sm:$0xff] %vm446, %v445
        %p448 = scmp.lt.s32.totalorder %s14, 1
        %s449 = scalar_select %p448, %s14, 1
        %s450 = smul.addr %s449, 8
        %s451 = scalar_lea.vmem %s2, %s450
        // Predicated region
        $region33: #{forward.1} parent=27 // pred_check
          %p452 = pneg %p79
        $region34: #{forward.1} parent=27 // pred_check_branch
          %454 = sbr.rel (%p452) target = $region36
        $region35: #{forward.1} parent=27 // pred_region
          _
        $region36: #{forward.1} parent=27 // pred_fallthru
          _
      $region28: #{forward.1} parent=5 // pred_fallthru
        _
      %p455 = scmp.le.s32.totalorder 2, %s9
      // Predicated region
      $region37: #{forward.1} parent=5 // pred_check
        %p456 = pneg %p455
      $region38: #{forward.1} parent=5 // pred_check_branch
        %458 = sbr.rel (%p456) target = $region40
      $region39: #{forward.1} parent=5 // pred_region
        %s459 = ssub.s32 %s9, 2
        // Predicated region
        $region41: #{forward.1} parent=39 // pred_check
          %p460 = pneg %p85
        $region42: #{forward.1} parent=39 // pred_check_branch
          %462 = sbr.rel (%p460) target = $region44
        $region43: #{forward.1} parent=39 // pred_region
          %p463 = scmp.lt.s32.totalorder %s15, 1
          %s464 = scalar_select %p463, %s15, 1
          %s465 = smul.addr %s464, 8
          %s466 = scalar_lea.vmem %s2, %s465
        $region44: #{forward.1} parent=39 // pred_fallthru
          _
      $region40: #{forward.1} parent=5 // pred_fallthru
        _
    $region6: #{forward.1} parent=1 // loop_footer
      %s13 = sadd.s32 1, %s9
    $region7: #{forward.1} parent=1 // loop_footer_branch
      %8 = sbr.rel target = $region3
    $region8: #{forward.1} parent=1 // loop_exit
      _
    %467 = vsyncpa [#allocation3], 1
    %s468 = scalar_lea.sflag [#allocation3], 1
    %469 = vsyncpa %s468, 1

</llo_original>
